<compile_context>
chip_gen: v7x
topology: tpu7x:2x2x1
jax: 0.10.0
libtpu: 0.0.40
codegen_flags: <defaults>
</compile_context>

<pallas_src>
import math
from functools import partial

import jax
import jax.numpy as jnp
import numpy as np
from jax.experimental import pallas as pl
from jax.experimental.pallas import tpu as pltpu

NU = 0.01 / math.pi   # viscosity, same constant as the PyTorch module
HID = 20              # hidden width of the MLP
LANE = 128            # vreg lane width / alignment quantum

# 128-aligned slab layout inside the single (20, 512) packed-weight buffer [R1]
_W1 = 0       # lanes [0:2)   W1 (20,2),  lane 2: b1 (20,1)
_W2 = 128     # lanes [128:148) W2 (20,20), lane 148: b2 (20,1)
_W3 = 256     # lanes [256:276) W3 (20,20), lane 276: b3 (20,1)
_W4 = 384     # lane 384: w4 as a (20,1) column, lane 385 row 0: b4
_PACK_COLS = 512


# ----------------------------------------------------------------------------
# Pallas kernel
# ----------------------------------------------------------------------------
def _pinn_kernel(nc, ni, nb, z_ref, utrue_ref, lw_ref, wp_ref, out_ref):
    # nc/ni/nb are the PADDED (128-multiple) segment sizes.
    nall = nc + ni + nb

    wp = wp_ref[...]                           # (20, 512) packed weights
    w1t = wp[:, _W1 + 0:_W1 + 1]               # (20,1) column multiplying t
    w1x = wp[:, _W1 + 1:_W1 + 2]               # (20,1) column multiplying x
    b1 = wp[:, _W1 + 2:_W1 + 3]                # (20,1)
    w2 = wp[:, _W2:_W2 + HID]                  # (20,20) -- lane-aligned [R1]
    b2 = wp[:, _W2 + HID:_W2 + HID + 1]
    w3 = wp[:, _W3:_W3 + HID]                  # (20,20) -- lane-aligned [R1]
    b3 = wp[:, _W3 + HID:_W3 + HID + 1]
    w4c = wp[:, _W4:_W4 + 1]                   # (20,1) output weights (column)
    b4 = wp[0:1, _W4 + 1:_W4 + 2]              # (1,1)

    z = z_ref[...]                             # (2, nall): row 0 = t, row 1 = x
    t_row = z[0:1, :]
    x_row = z[1:2, :]

    # ---------------- layer 1 (2 -> 20): VPU only, analytic tangents --------
    a_val = w1t * t_row + w1x * x_row + b1     # (20, nall)
    g_val = jnp.tanh(a_val)

    g_c = g_val[:, :nc]                        # value stream at collocation pts
    s_c = 1.0 - g_c * g_c                      # tanh'(a)
    h_t = s_c * w1t                            # d/dt stream   (a_t = w1t)
    h_x = s_c * w1x                            # d/dx stream   (a_x = w1x)
    h_xx = -2.0 * s_c * g_c * (w1x * w1x)      # d2/dx2 stream (a_xx = 0)

    # fused batch columns: [value(zc,zi,zb) | u_t(zc) | u_x(zc) | u_xx(zc)]
    # every boundary is a multiple of 128 -> pure vreg placement [R9]
    h = jnp.concatenate([g_val, h_t, h_x, h_xx], axis=1)   # (20, nall + 3*nc)

    # ---------------- hidden layers 2,3: one fused MXU matmul each ----------
    for w, b in ((w2, b2), (w3, b3)):
        a = jnp.dot(w, h, preferred_element_type=jnp.float32)  # (20, nall+3nc)
        a_val = a[:, :nall] + b
        a_t = a[:, nall:nall + nc]
        a_x = a[:, nall + nc:nall + 2 * nc]
        a_xx = a[:, nall + 2 * nc:]
        g_val = jnp.tanh(a_val)
        g_c = g_val[:, :nc]
        s_c = 1.0 - g_c * g_c
        h_t = s_c * a_t
        h_x = s_c * a_x
        h_xx = s_c * (a_xx - 2.0 * g_c * a_x * a_x)
        h = jnp.concatenate([g_val, h_t, h_x, h_xx], axis=1)

    # ---------------- output layer 4 (20 -> 1): VPU mult + sublane reduce ---
    # [R2] no M=1 MXU matmul: broadcast-mult by the w4 column, reduce sublanes.
    u_row = jnp.sum(w4c * h, axis=0, keepdims=True)        # (1, nall + 3*nc)
    u_all = u_row[:, :nall] + b4               # predictions at zc | zi | zb
    u_c = u_all[:, :nc]
    u_t = u_row[:, nall:nall + nc]
    u_x = u_row[:, nall + nc:nall + 2 * nc]
    u_xx = u_row[:, nall + 2 * nc:]

    # ---------------- fused weighted loss reduction [R4] ---------------------
    f = u_t + u_c * u_x - NU * u_xx                         # PDE residual
    resid = jnp.concatenate([f, u_all[:, nc:] - utrue_ref[...]], axis=1)  # (1, nall)
    # lw carries 1/nc, 1/ni, 1/nb on real lanes and 0 on padding lanes, so this
    # single reduce equals loss_f + loss_i + loss_b exactly.
    out_ref[0, 0] = jnp.sum(lw_ref[...] * resid * resid)


# ----------------------------------------------------------------------------
# Wrapper
# ----------------------------------------------------------------------------
def _round_up(n, m=LANE):
    return ((n + m - 1) // m) * m


def _pad_rows(a, n):
    pad = n - a.shape[0]
    if pad == 0:
        return a
    return jnp.concatenate([a, jnp.zeros((pad, a.shape[1]), a.dtype)], axis=0)


def pack_params(params):
    """Pack torch-style ((out,in) weight, (out,1) bias) pairs into (20, 512)
    with every MXU-feeding slab starting on a 128-lane boundary [R1]."""
    (w1, b1), (w2, b2), (w3, b3), (w4, b4) = params
    f32 = jnp.float32
    wp = jnp.zeros((HID, _PACK_COLS), f32)
    wp = wp.at[:, _W1:_W1 + 2].set(w1.astype(f32))
    wp = wp.at[:, _W1 + 2:_W1 + 3].set(b1.astype(f32))
    wp = wp.at[:, _W2:_W2 + HID].set(w2.astype(f32))
    wp = wp.at[:, _W2 + HID:_W2 + HID + 1].set(b2.astype(f32))
    wp = wp.at[:, _W3:_W3 + HID].set(w3.astype(f32))
    wp = wp.at[:, _W3 + HID:_W3 + HID + 1].set(b3.astype(f32))
    wp = wp.at[:, _W4:_W4 + 1].set(w4.astype(f32).T)        # w4 as a column
    wp = wp.at[0:1, _W4 + 1:_W4 + 2].set(b4.astype(f32))
    return wp


# [R8] everything (packing + pallas_call) under one jit so the wrapper-side
# concats/transpose/scatters fuse with the custom call and are not re-dispatched
# per invocation.
@jax.jit
def burgers_pinn_loss(t_c, x_c, t_i, x_i, u_i, t_b, x_b, u_b, params):
    nc, ni, nb = t_c.shape[0], t_i.shape[0], t_b.shape[0]
    # [R9] pad every segment to a multiple of 128 so all in-kernel lane
    # slices/concats stay vreg-aligned for arbitrary point counts.
    nc_p, ni_p, nb_p = _round_up(nc), _round_up(ni), _round_up(nb)
    nall_p = nc_p + ni_p + nb_p

    # one lane-dense (2, Nall) buffer for all point sets: [zc | zi | zb]
    t_all = jnp.concatenate(
        [_pad_rows(t_c, nc_p), _pad_rows(t_i, ni_p), _pad_rows(t_b, nb_p)], axis=0)
    x_all = jnp.concatenate(
        [_pad_rows(x_c, nc_p), _pad_rows(x_i, ni_p), _pad_rows(x_b, nb_p)], axis=0)
    z_all = jnp.concatenate([t_all, x_all], axis=1).T.astype(jnp.float32)  # (2, nall_p)
    u_true = jnp.concatenate(
        [_pad_rows(u_i, ni_p), _pad_rows(u_b, nb_p)], axis=0).T.astype(jnp.float32)

    # [R4]/[R9] per-lane loss weights: mean factors on real lanes, 0 on padding.
    lw_np = np.zeros((1, nall_p), np.float32)
    lw_np[0, :nc] = 1.0 / nc
    lw_np[0, nc_p:nc_p + ni] = 1.0 / ni
    lw_np[0, nc_p + ni_p:nc_p + ni_p + nb] = 1.0 / nb
    lw = jnp.asarray(lw_np)

    wp = pack_params(params)                                                # (20, 512)

    vmem = pl.BlockSpec(memory_space=pltpu.MemorySpace.VMEM)
    out = pl.pallas_call(
        partial(_pinn_kernel, nc_p, ni_p, nb_p),
        out_shape=jax.ShapeDtypeStruct((1, 1), jnp.float32),
        in_specs=[vmem, vmem, vmem, vmem],
        out_specs=pl.BlockSpec(memory_space=pltpu.MemorySpace.SMEM),
    )(z_all, u_true, lw, wp)
    return out[0, 0]


# ----------------------------------------------------------------------------
# Deterministic parameter init (same shapes / init style as torch.nn.Linear)
# ----------------------------------------------------------------------------
def init_params(key):
    dims = [(2, 20), (20, 20), (20, 20), (20, 1)]
    params = []
    for fan_in, fan_out in dims:
        key, k_w, k_b = jax.random.split(key, 3)
        bound = 1.0 / math.sqrt(fan_in)
        w = jax.random.uniform(k_w, (fan_out, fan_in), jnp.float32, -bound, bound)
        b = jax.random.uniform(k_b, (fan_out, 1), jnp.float32, -bound, bound)
        params.append((w, b))
    return params


# ----------------------------------------------------------------------------
# Pure-JAX reference (uses autodiff, mirrors the torch.autograd.grad path)
# ----------------------------------------------------------------------------
def _mlp_ref(z, params):
    h = z
    for i, (w, b) in enumerate(params):
        h = h @ w.T + b.T
        if i < len(params) - 1:
            h = jnp.tanh(h)
    return h


def ref_loss(t_c, x_c, t_i, x_i, u_i, t_b, x_b, u_b, params):
    def net_scalar(t, x):
        return _mlp_ref(jnp.stack([t, x])[None, :], params)[0, 0]

    tc, xc = t_c[:, 0], x_c[:, 0]
    u = jax.vmap(net_scalar)(tc, xc)
    u_t = jax.vmap(jax.grad(net_scalar, argnums=0))(tc, xc)
    u_x = jax.vmap(jax.grad(net_scalar, argnums=1))(tc, xc)
    u_xx = jax.vmap(jax.grad(jax.grad(net_scalar, argnums=1), argnums=1))(tc, xc)
    f = u_t + u * u_x - NU * u_xx
    loss_f = jnp.mean(f ** 2)

    ui_pred = _mlp_ref(jnp.concatenate([t_i, x_i], axis=1), params)
    loss_i = jnp.mean((ui_pred - u_i) ** 2)
    ub_pred = _mlp_ref(jnp.concatenate([t_b, x_b], axis=1), params)
    loss_b = jnp.mean((ub_pred - u_b) ** 2)
    return loss_f + loss_i + loss_b


# ----------------------------------------------------------------------------
if __name__ == "__main__":
    key = jax.random.PRNGKey(0)
    k_params, k_data = jax.random.split(key)
    params = init_params(k_params)

    ks = jax.random.split(k_data, 5)
    # Deliberately NOT multiples of 128: exercises the wrapper-side padding and
    # the zero-weighted padding lanes in the fused loss reduction [R9].
    Nc, Ni, Nb = 100, 60, 40

    t_c = jax.random.uniform(ks[0], (Nc, 1), jnp.float32, 0.0, 1.0)
    x_c = jax.random.uniform(ks[1], (Nc, 1), jnp.float32, -1.0, 1.0)

    t_i = jnp.zeros((Ni, 1), jnp.float32)
    x_i = jax.random.uniform(ks[2], (Ni, 1), jnp.float32, -1.0, 1.0)
    u_i = -jnp.sin(math.pi * x_i)

    t_b = jax.random.uniform(ks[3], (Nb, 1), jnp.float32, 0.0, 1.0)
    x_b = jnp.where(jax.random.uniform(ks[4], (Nb, 1)) > 0.5, 1.0, -1.0).astype(jnp.float32)
    u_b = jnp.zeros((Nb, 1), jnp.float32)

    loss = burgers_pinn_loss(t_c, x_c, t_i, x_i, u_i, t_b, x_b, u_b, params)
    loss = jax.block_until_ready(loss)

    ref = ref_loss(t_c, x_c, t_i, x_i, u_i, t_b, x_b, u_b, params)
    np.testing.assert_allclose(np.asarray(loss), np.asarray(ref), rtol=1e-2, atol=1e-3)

    print("KERNEL_OK")
</pallas_src>

<mosaic_0001>
module attributes {stable_mosaic.version = 11 : i64} {
  func.func @_pinn_kernel(%arg0: memref<2x384xf32, #tpu.memory_space<vmem>>, %arg1: memref<1x256xf32, #tpu.memory_space<vmem>>, %arg2: memref<1x384xf32, #tpu.memory_space<vmem>>, %arg3: memref<20x512xf32, #tpu.memory_space<vmem>>, %arg4: memref<1x1xf32, #tpu.memory_space<smem>>) attributes {dimension_semantics = [], scalar_prefetch = 0 : i64, scratch_operands = 0 : i64, tpu.core_type = #tpu.core_type<tc>} {
    %c0 = arith.constant 0 : index
    %c0_0 = arith.constant 0 : index
    %0 = vector.load %arg3[%c0, %c0_0] : memref<20x512xf32, #tpu.memory_space<vmem>>, vector<20x512xf32>
    %1 = vector.extract_strided_slice %0 {offsets = [0, 0], sizes = [20, 1], strides = [1, 1]} : vector<20x512xf32> to vector<20x1xf32>
    %2 = vector.extract_strided_slice %0 {offsets = [0, 1], sizes = [20, 1], strides = [1, 1]} : vector<20x512xf32> to vector<20x1xf32>
    %3 = vector.extract_strided_slice %0 {offsets = [0, 2], sizes = [20, 1], strides = [1, 1]} : vector<20x512xf32> to vector<20x1xf32>
    %4 = vector.extract_strided_slice %0 {offsets = [0, 128], sizes = [20, 20], strides = [1, 1]} : vector<20x512xf32> to vector<20x20xf32>
    %5 = vector.extract_strided_slice %0 {offsets = [0, 148], sizes = [20, 1], strides = [1, 1]} : vector<20x512xf32> to vector<20x1xf32>
    %6 = vector.extract_strided_slice %0 {offsets = [0, 256], sizes = [20, 20], strides = [1, 1]} : vector<20x512xf32> to vector<20x20xf32>
    %7 = vector.extract_strided_slice %0 {offsets = [0, 276], sizes = [20, 1], strides = [1, 1]} : vector<20x512xf32> to vector<20x1xf32>
    %8 = vector.extract_strided_slice %0 {offsets = [0, 384], sizes = [20, 1], strides = [1, 1]} : vector<20x512xf32> to vector<20x1xf32>
    %9 = vector.extract_strided_slice %0 {offsets = [0, 385], sizes = [1, 1], strides = [1, 1]} : vector<20x512xf32> to vector<1x1xf32>
    %c0_1 = arith.constant 0 : index
    %c0_2 = arith.constant 0 : index
    %10 = vector.load %arg0[%c0_1, %c0_2] : memref<2x384xf32, #tpu.memory_space<vmem>>, vector<2x384xf32>
    %11 = vector.extract_strided_slice %10 {offsets = [0, 0], sizes = [1, 384], strides = [1, 1]} : vector<2x384xf32> to vector<1x384xf32>
    %12 = vector.extract_strided_slice %10 {offsets = [1, 0], sizes = [1, 384], strides = [1, 1]} : vector<2x384xf32> to vector<1x384xf32>
    %13 = vector.broadcast %1 : vector<20x1xf32> to vector<20x384xf32>
    %14 = vector.broadcast %11 : vector<1x384xf32> to vector<20x384xf32>
    %15 = arith.mulf %13, %14 : vector<20x384xf32>
    %16 = vector.broadcast %2 : vector<20x1xf32> to vector<20x384xf32>
    %17 = vector.broadcast %12 : vector<1x384xf32> to vector<20x384xf32>
    %18 = arith.mulf %16, %17 : vector<20x384xf32>
    %19 = arith.addf %15, %18 : vector<20x384xf32>
    %20 = vector.broadcast %3 : vector<20x1xf32> to vector<20x384xf32>
    %21 = arith.addf %19, %20 : vector<20x384xf32>
    %22 = math.tanh %21 : vector<20x384xf32>
    %23 = vector.extract_strided_slice %22 {offsets = [0, 0], sizes = [20, 128], strides = [1, 1]} : vector<20x384xf32> to vector<20x128xf32>
    %24 = arith.mulf %23, %23 : vector<20x128xf32>
    %cst = arith.constant 1.000000e+00 : f32
    %25 = vector.broadcast %cst : f32 to vector<20x128xf32>
    %26 = arith.subf %25, %24 : vector<20x128xf32>
    %27 = vector.broadcast %1 : vector<20x1xf32> to vector<20x128xf32>
    %28 = arith.mulf %26, %27 : vector<20x128xf32>
    %29 = vector.broadcast %2 : vector<20x1xf32> to vector<20x128xf32>
    %30 = arith.mulf %26, %29 : vector<20x128xf32>
    %cst_3 = arith.constant -2.000000e+00 : f32
    %31 = vector.broadcast %cst_3 : f32 to vector<20x128xf32>
    %32 = arith.mulf %31, %26 : vector<20x128xf32>
    %33 = arith.mulf %32, %23 : vector<20x128xf32>
    %34 = arith.mulf %2, %2 : vector<20x1xf32>
    %35 = vector.broadcast %34 : vector<20x1xf32> to vector<20x128xf32>
    %36 = arith.mulf %33, %35 : vector<20x128xf32>
    %37 = tpu.concatenate %22, %28, %30, %36 in 1 : vector<20x384xf32>, vector<20x128xf32>, vector<20x128xf32>, vector<20x128xf32> -> vector<20x768xf32>
    %cst_4 = arith.constant dense<0.000000e+00> : vector<20x768xf32>
    %38 = tpu.matmul %4, %37, %cst_4 {dimension_numbers = #tpu.dot_dimension_numbers<[1], [0], [0], [1], [0, 0, 1, 1], [], []>} : vector<20x20xf32>, vector<20x768xf32>, vector<20x768xf32> -> vector<20x768xf32>
    %39 = vector.extract_strided_slice %38 {offsets = [0, 0], sizes = [20, 384], strides = [1, 1]} : vector<20x768xf32> to vector<20x384xf32>
    %40 = vector.broadcast %5 : vector<20x1xf32> to vector<20x384xf32>
    %41 = arith.addf %39, %40 : vector<20x384xf32>
    %42 = vector.extract_strided_slice %38 {offsets = [0, 384], sizes = [20, 128], strides = [1, 1]} : vector<20x768xf32> to vector<20x128xf32>
    %43 = vector.extract_strided_slice %38 {offsets = [0, 512], sizes = [20, 128], strides = [1, 1]} : vector<20x768xf32> to vector<20x128xf32>
    %44 = vector.extract_strided_slice %38 {offsets = [0, 640], sizes = [20, 128], strides = [1, 1]} : vector<20x768xf32> to vector<20x128xf32>
    %45 = math.tanh %41 : vector<20x384xf32>
    %46 = vector.extract_strided_slice %45 {offsets = [0, 0], sizes = [20, 128], strides = [1, 1]} : vector<20x384xf32> to vector<20x128xf32>
    %47 = arith.mulf %46, %46 : vector<20x128xf32>
    %cst_5 = arith.constant 1.000000e+00 : f32
    %48 = vector.broadcast %cst_5 : f32 to vector<20x128xf32>
    %49 = arith.subf %48, %47 : vector<20x128xf32>
    %50 = arith.mulf %49, %42 : vector<20x128xf32>
    %51 = arith.mulf %49, %43 : vector<20x128xf32>
    %cst_6 = arith.constant 2.000000e+00 : f32
    %52 = vector.broadcast %cst_6 : f32 to vector<20x128xf32>
    %53 = arith.mulf %52, %46 : vector<20x128xf32>
    %54 = arith.mulf %53, %43 : vector<20x128xf32>
    %55 = arith.mulf %54, %43 : vector<20x128xf32>
    %56 = arith.subf %44, %55 : vector<20x128xf32>
    %57 = arith.mulf %49, %56 : vector<20x128xf32>
    %58 = tpu.concatenate %45, %50, %51, %57 in 1 : vector<20x384xf32>, vector<20x128xf32>, vector<20x128xf32>, vector<20x128xf32> -> vector<20x768xf32>
    %cst_7 = arith.constant dense<0.000000e+00> : vector<20x768xf32>
    %59 = tpu.matmul %6, %58, %cst_7 {dimension_numbers = #tpu.dot_dimension_numbers<[1], [0], [0], [1], [0, 0, 1, 1], [], []>} : vector<20x20xf32>, vector<20x768xf32>, vector<20x768xf32> -> vector<20x768xf32>
    %60 = vector.extract_strided_slice %59 {offsets = [0, 0], sizes = [20, 384], strides = [1, 1]} : vector<20x768xf32> to vector<20x384xf32>
    %61 = vector.broadcast %7 : vector<20x1xf32> to vector<20x384xf32>
    %62 = arith.addf %60, %61 : vector<20x384xf32>
    %63 = vector.extract_strided_slice %59 {offsets = [0, 384], sizes = [20, 128], strides = [1, 1]} : vector<20x768xf32> to vector<20x128xf32>
    %64 = vector.extract_strided_slice %59 {offsets = [0, 512], sizes = [20, 128], strides = [1, 1]} : vector<20x768xf32> to vector<20x128xf32>
    %65 = vector.extract_strided_slice %59 {offsets = [0, 640], sizes = [20, 128], strides = [1, 1]} : vector<20x768xf32> to vector<20x128xf32>
    %66 = math.tanh %62 : vector<20x384xf32>
    %67 = vector.extract_strided_slice %66 {offsets = [0, 0], sizes = [20, 128], strides = [1, 1]} : vector<20x384xf32> to vector<20x128xf32>
    %68 = arith.mulf %67, %67 : vector<20x128xf32>
    %cst_8 = arith.constant 1.000000e+00 : f32
    %69 = vector.broadcast %cst_8 : f32 to vector<20x128xf32>
    %70 = arith.subf %69, %68 : vector<20x128xf32>
    %71 = arith.mulf %70, %63 : vector<20x128xf32>
    %72 = arith.mulf %70, %64 : vector<20x128xf32>
    %cst_9 = arith.constant 2.000000e+00 : f32
    %73 = vector.broadcast %cst_9 : f32 to vector<20x128xf32>
    %74 = arith.mulf %73, %67 : vector<20x128xf32>
    %75 = arith.mulf %74, %64 : vector<20x128xf32>
    %76 = arith.mulf %75, %64 : vector<20x128xf32>
    %77 = arith.subf %65, %76 : vector<20x128xf32>
    %78 = arith.mulf %70, %77 : vector<20x128xf32>
    %79 = tpu.concatenate %66, %71, %72, %78 in 1 : vector<20x384xf32>, vector<20x128xf32>, vector<20x128xf32>, vector<20x128xf32> -> vector<20x768xf32>
    %80 = vector.broadcast %8 : vector<20x1xf32> to vector<20x768xf32>
    %81 = arith.mulf %80, %79 : vector<20x768xf32>
    %cst_10 = arith.constant dense<0.000000e+00> : vector<768xf32>
    %82 = vector.multi_reduction <add>, %81, %cst_10 [0] : vector<20x768xf32> to vector<768xf32>
    %83 = vector.shape_cast %82 : vector<768xf32> to vector<1x768xf32>
    %84 = vector.extract_strided_slice %83 {offsets = [0, 0], sizes = [1, 384], strides = [1, 1]} : vector<1x768xf32> to vector<1x384xf32>
    %85 = vector.broadcast %9 : vector<1x1xf32> to vector<1x384xf32>
    %86 = arith.addf %84, %85 : vector<1x384xf32>
    %87 = vector.extract_strided_slice %86 {offsets = [0, 0], sizes = [1, 128], strides = [1, 1]} : vector<1x384xf32> to vector<1x128xf32>
    %88 = vector.extract_strided_slice %83 {offsets = [0, 384], sizes = [1, 128], strides = [1, 1]} : vector<1x768xf32> to vector<1x128xf32>
    %89 = vector.extract_strided_slice %83 {offsets = [0, 512], sizes = [1, 128], strides = [1, 1]} : vector<1x768xf32> to vector<1x128xf32>
    %90 = vector.extract_strided_slice %83 {offsets = [0, 640], sizes = [1, 128], strides = [1, 1]} : vector<1x768xf32> to vector<1x128xf32>
    %91 = arith.mulf %87, %89 : vector<1x128xf32>
    %92 = arith.addf %88, %91 : vector<1x128xf32>
    %cst_11 = arith.constant 0.00318309898 : f32
    %93 = vector.broadcast %cst_11 : f32 to vector<1x128xf32>
    %94 = arith.mulf %93, %90 : vector<1x128xf32>
    %95 = arith.subf %92, %94 : vector<1x128xf32>
    %96 = vector.extract_strided_slice %86 {offsets = [0, 128], sizes = [1, 256], strides = [1, 1]} : vector<1x384xf32> to vector<1x256xf32>
    %c0_12 = arith.constant 0 : index
    %c0_13 = arith.constant 0 : index
    %97 = vector.load %arg1[%c0_12, %c0_13] : memref<1x256xf32, #tpu.memory_space<vmem>>, vector<1x256xf32>
    %98 = arith.subf %96, %97 : vector<1x256xf32>
    %99 = tpu.concatenate %95, %98 in 1 : vector<1x128xf32>, vector<1x256xf32> -> vector<1x384xf32>
    %c0_14 = arith.constant 0 : index
    %c0_15 = arith.constant 0 : index
    %100 = vector.load %arg2[%c0_14, %c0_15] : memref<1x384xf32, #tpu.memory_space<vmem>>, vector<1x384xf32>
    %101 = arith.mulf %100, %99 : vector<1x384xf32>
    %102 = arith.mulf %101, %99 : vector<1x384xf32>
    %103 = vector.shape_cast %102 : vector<1x384xf32> to vector<1x1x384xf32>
    %cst_16 = arith.constant dense<0.000000e+00> : vector<1xf32>
    %104 = vector.multi_reduction <add>, %103, %cst_16 [1, 2] : vector<1x1x384xf32> to vector<1xf32>
    %105 = vector.shape_cast %104 : vector<1xf32> to vector<1x1x1xf32>
    %106 = vector.extract %105[0, 0, 0] : f32 from vector<1x1x1xf32>
    %c0_17 = arith.constant 0 : index
    %c0_18 = arith.constant 0 : index
    %107 = memref.load %arg4[%c0_17, %c0_18] : memref<1x1xf32, #tpu.memory_space<smem>>
    memref.store %106, %arg4[%c0_17, %c0_18] : memref<1x1xf32, #tpu.memory_space<smem>>
    return
  }
}

</mosaic_0001>

<llo_original>
// kernel: burgers_pinn_loss.1
$region0: #{burgers_pinn_loss.1}
  #allocation0 [shape = 'u32[]', space=smem, size = 0x4, offset = 0x4, fixed_abs, tag = 'smem constant byte address 0x4 - core index']
  #allocation1 [shape = 'u32[144,128]{1,0:T(1,128)}', space=vmem, size = 0x12000, scoped, tag = 'internal scratch']
  %s0 = inlined_call_operand.vmem [shape: f32[2,384], index: 0, kind: input, shape index: {}]
  %s1 = inlined_call_operand.vmem [shape: f32[1,256], index: 1, kind: input, shape index: {}]
  %s2 = inlined_call_operand.vmem [shape: f32[1,384], index: 2, kind: input, shape index: {}]
  %s3 = inlined_call_operand.vmem [shape: f32[20,512], index: 3, kind: input, shape index: {}]
  %s4 = inlined_call_operand.hbm [shape: f32[1,1], index: 4, kind: output, shape index: {}]
  %s5 = sld [smem:[#allocation0]]
  $region26: #{burgers_pinn_loss.1} parent=0
    _
  %s7 = ssub.s32 1, %s5
  %s8 = scalar_select 0, %s7, %s5
  $region1: #{burgers_pinn_loss.1} parent=0
    #allocation2 [shape = 'u8[512]{0}', space=smem, size = 0x200, scoped, tag = 'output window, operand 0, single buffered']
    #allocation3 [shape = 's32[1]{0}', space=sflag, size = 0x4, scoped, tag = 'scoped memory for burgers_pinn_loss.1']
    %9 = vsyncpa [#allocation3], 0
    // Predicated region
    $region2: #{burgers_pinn_loss.1} parent=1 // pred_check
      _
    $region3: #{burgers_pinn_loss.1} parent=1 // pred_check_branch
      %11 = sbr.rel (0) target = $region5
    $region4: #{burgers_pinn_loss.1} parent=1 // pred_region
      _
    $region5: #{burgers_pinn_loss.1} parent=1 // pred_fallthru
      _
    // Predicated region
    $region6: #{burgers_pinn_loss.1} parent=1 // pred_check
      _
    $region7: #{burgers_pinn_loss.1} parent=1 // pred_check_branch
      %13 = sbr.rel (0) target = $region9
    $region8: #{burgers_pinn_loss.1} parent=1 // pred_region
      _
    $region9: #{burgers_pinn_loss.1} parent=1 // pred_fallthru
      _
    // Predicated region
    $region10: #{burgers_pinn_loss.1} parent=1 // pred_check
      _
    $region11: #{burgers_pinn_loss.1} parent=1 // pred_check_branch
      %15 = sbr.rel (0) target = $region13
    $region12: #{burgers_pinn_loss.1} parent=1 // pred_region
      _
    $region13: #{burgers_pinn_loss.1} parent=1 // pred_fallthru
      _
    // Predicated region
    $region14: #{burgers_pinn_loss.1} parent=1 // pred_check
      _
    $region15: #{burgers_pinn_loss.1} parent=1 // pred_check_branch
      %17 = sbr.rel (0) target = $region17
    $region16: #{burgers_pinn_loss.1} parent=1 // pred_region
      _
    $region17: #{burgers_pinn_loss.1} parent=1 // pred_fallthru
      _
    %v18 = vld [vmem:[%s3] sm:$0xff]
    %v19 = vld [vmem:[%s3 + $0x8] sm:$0xff]
    %v20 = vld [vmem:[%s3 + $0x10] sm:$0xff]
    %v21 = vld [vmem:[%s3 + $0x18] sm:$0xff]
    %v22 = vld [vmem:[%s3 + $0x20] sm:$0xff]
    %v23 = vld [vmem:[%s3 + $0x28] sm:$0xff]
    %v24 = vld [vmem:[%s3 + $0x30] sm:$0xff]
    %v25 = vld [vmem:[%s3 + $0x38] sm:$0xff]
    %v26 = vld [vmem:[%s3 + $0x40] sm:$0xf]
    %v27 = vld [vmem:[%s3 + $0x48] sm:$0xf]
    %v28 = vld [vmem:[%s3 + $0x50] sm:$0xf]
    %v29 = vld [vmem:[%s3 + $0x58] sm:$0xf]
    %v30 = vld [vmem:[%s0] sm:$0x3f]
    %32 = vset.pattern.permute.xlu0 0
    %33 = vperm.xlu0 %32, %v18
    %v34 = vpop.permute.xlu0 %33
    %37 = vset.pattern.permute.xlu0 0
    %38 = vperm.xlu0 %37, %v22
    %v39 = vpop.permute.xlu0 %38
    %42 = vset.pattern.permute.xlu0 0
    %43 = vperm.xlu0 %42, %v26
    %v44 = vpop.permute.xlu0 %43
    %v47 = vlaneseq
    %v48 = vshrl.u32 %v47, 7
    %v49 = vsub.s32 0, %v48
    %v50 = vrot.slane %v30, %v49
    %v51 = vlaneseq
    %v52 = vshrl.u32 %v51, 7
    %v53 = vsub.s32 2, %v52
    %v54 = vrot.slane %v30, %v53
    %v55 = vlaneseq
    %v56 = vshrl.u32 %v55, 7
    %v57 = vsub.s32 4, %v56
    %v58 = vrot.slane %v30, %v57
    %v62 = vlaneseq
    %v63 = vshrl.u32 %v62, 7
    %v64 = vsub.s32 0, %v63
    %v65 = vrot.slane %v50, %v64
    %v66 = vlaneseq
    %v67 = vshrl.u32 %v66, 7
    %v68 = vsub.s32 0, %v67
    %v69 = vrot.slane %v54, %v68
    %v70 = vlaneseq
    %v71 = vshrl.u32 %v70, 7
    %v72 = vsub.s32 0, %v71
    %v73 = vrot.slane %v58, %v72
    %v74 = vmul.f32 %v34, %v65
    %v75 = vmul.f32 %v34, %v69
    %v76 = vmul.f32 %v34, %v73
    %v77 = vmul.f32 %v39, %v65
    %v78 = vmul.f32 %v39, %v69
    %v79 = vmul.f32 %v39, %v73
    %v80 = vmul.f32 %v44, %v65
    %v81 = vmul.f32 %v44, %v69
    %v82 = vmul.f32 %v44, %v73
    %83 = vset.pattern.permute.xlu0 1
    %84 = vperm.xlu0 %83, %v18
    %v85 = vpop.permute.xlu0 %84
    %87 = vset.pattern.permute.xlu0 1
    %88 = vperm.xlu0 %87, %v22
    %v89 = vpop.permute.xlu0 %88
    %91 = vset.pattern.permute.xlu0 1
    %92 = vperm.xlu0 %91, %v26
    %v93 = vpop.permute.xlu0 %92
    %v95 = vlaneseq
    %v96 = vshrl.u32 %v95, 7
    %v97 = vsub.s32 1, %v96
    %v98 = vrot.slane %v30, %v97
    %v99 = vlaneseq
    %v100 = vshrl.u32 %v99, 7
    %v101 = vsub.s32 3, %v100
    %v102 = vrot.slane %v30, %v101
    %v103 = vlaneseq
    %v104 = vshrl.u32 %v103, 7
    %v105 = vsub.s32 5, %v104
    %v106 = vrot.slane %v30, %v105
    %v110 = vlaneseq
    %v111 = vshrl.u32 %v110, 7
    %v112 = vsub.s32 1, %v111
    %v113 = vrot.slane %v98, %v112
    %v114 = vlaneseq
    %v115 = vshrl.u32 %v114, 7
    %v116 = vsub.s32 1, %v115
    %v117 = vrot.slane %v102, %v116
    %v118 = vlaneseq
    %v119 = vshrl.u32 %v118, 7
    %v120 = vsub.s32 1, %v119
    %v121 = vrot.slane %v106, %v120
    %v122 = vmul.f32 %v85, %v113
    %v123 = vmul.f32 %v85, %v117
    %v124 = vmul.f32 %v85, %v121
    %v125 = vmul.f32 %v89, %v113
    %v126 = vmul.f32 %v89, %v117
    %v127 = vmul.f32 %v89, %v121
    %v128 = vmul.f32 %v93, %v113
    %v129 = vmul.f32 %v93, %v117
    %v130 = vmul.f32 %v93, %v121
    %v131 = vadd.f32 %v74, %v122
    %v132 = vadd.f32 %v75, %v123
    %v133 = vadd.f32 %v76, %v124
    %v134 = vadd.f32 %v77, %v125
    %v135 = vadd.f32 %v78, %v126
    %v136 = vadd.f32 %v79, %v127
    %v137 = vadd.f32 %v80, %v128
    %v138 = vadd.f32 %v81, %v129
    %v139 = vadd.f32 %v82, %v130
    %140 = vset.pattern.permute.xlu0 2
    %141 = vperm.xlu0 %140, %v18
    %v142 = vpop.permute.xlu0 %141
    %144 = vset.pattern.permute.xlu0 2
    %145 = vperm.xlu0 %144, %v22
    %v146 = vpop.permute.xlu0 %145
    %148 = vset.pattern.permute.xlu0 2
    %149 = vperm.xlu0 %148, %v26
    %v150 = vpop.permute.xlu0 %149
    %v152 = vadd.f32 %v131, %v142
    %v153 = vadd.f32 %v132, %v142
    %v154 = vadd.f32 %v133, %v142
    %v155 = vadd.f32 %v134, %v146
    %v156 = vadd.f32 %v135, %v146
    %v157 = vadd.f32 %v136, %v146
    %v158 = vadd.f32 %v137, %v150
    %v159 = vadd.f32 %v138, %v150
    %v160 = vadd.f32 %v139, %v150
    %v161 = vtanh.pop %v152
    %v162 = vtanh.pop %v153
    %v163 = vtanh.pop %v154
    %v164 = vtanh.pop %v155
    %v165 = vtanh.pop %v156
    %v166 = vtanh.pop %v157
    %v167 = vtanh.pop %v158
    %v168 = vtanh.pop %v159
    %v169 = vtanh.pop %v160
    %v170 = vmul.f32 %v161, %v161
    %v171 = vmul.f32 %v164, %v164
    %v172 = vmul.f32 %v167, %v167
    %v173 = vsub.f32 1.0, %v170
    %v174 = vsub.f32 1.0, %v171
    %v175 = vsub.f32 1.0, %v172
    %v176 = vmul.f32 %v173, %v34
    %v177 = vmul.f32 %v174, %v39
    %v178 = vmul.f32 %v175, %v44
    %v179 = vmul.f32 %v173, %v85
    %v180 = vmul.f32 %v174, %v89
    %v181 = vmul.f32 %v175, %v93
    %v182 = vmul.f32 %v173, -2.0
    %v183 = vmul.f32 %v174, -2.0
    %v184 = vmul.f32 %v175, -2.0
    %v185 = vmul.f32 %v182, %v161
    %v186 = vmul.f32 %v183, %v164
    %v187 = vmul.f32 %v184, %v167
    %v188 = vmul.f32 %v18, %v18
    %v189 = vmul.f32 %v22, %v22
    %v190 = vmul.f32 %v26, %v26
    %192 = vset.pattern.permute.xlu0 1
    %193 = vperm.xlu0 %192, %v188
    %v194 = vpop.permute.xlu0 %193
    %197 = vset.pattern.permute.xlu0 1
    %198 = vperm.xlu0 %197, %v189
    %v199 = vpop.permute.xlu0 %198
    %202 = vset.pattern.permute.xlu0 1
    %203 = vperm.xlu0 %202, %v190
    %v204 = vpop.permute.xlu0 %203
    %v206 = vmul.f32 %v185, %v194
    %v207 = vmul.f32 %v186, %v199
    %v208 = vmul.f32 %v187, %v204
    %vm209 = vcmask 162816
    %v211 = vsel %vm209, %v19, 0
    %v214 = vsel %vm209, %v23, 0
    %v217 = vsel %vm209, %v27, 0
    %vm219 = vcmask 1043456
    %v221 = vsel %vm219, %v167, 0
    %v224 = vsel %vm219, %v168, 0
    %v227 = vsel %vm219, %v169, 0
    %v230 = vsel %vm219, %v178, 0
    %v233 = vsel %vm219, %v181, 0
    %v236 = vsel %vm219, %v208, 0
    %238 = vmatprep.subr.mxu0 %v162
    %239 = vmatpush1.msra.mxu0 %v161
    %240 = vmatprep.subr.mxu0 %v165
    %241 = vmatpush1.msra.mxu0 %v164
    %242 = vmatprep.subr.mxu0 %v224
    %243 = vmatpush1.msra.mxu0 %v221
    %244 = vmatprep.subr.mxu0 0.0
    %245 = vmatpush1.msra.mxu0 0.0
    %246 = vmatprep.subr.mxu0 0.0
    %247 = vmatpush1.msra.mxu0 0.0
    %248 = vmatprep.subr.mxu0 0.0
    %249 = vmatpush1.msra.mxu0 0.0
    %250 = vmatprep.subr.mxu0 0.0
    %251 = vmatpush1.msra.mxu0 0.0
    %252 = vmatprep.subr.mxu0 0.0
    %253 = vmatpush1.msra.mxu0 0.0
    %254 = vmatprep.subr.mxu0 0.0
    %255 = vmatpush1.msra.mxu0 0.0
    %256 = vmatprep.subr.mxu0 0.0
    %257 = vmatpush1.msra.mxu0 0.0
    %258 = vmatprep.subr.mxu0 0.0
    %259 = vmatpush1.msra.mxu0 0.0
    %260 = vmatprep.subr.mxu0 0.0
    %261 = vmatpush1.msra.mxu0 0.0
    %262 = vmatprep.subr.mxu0 0.0
    %263 = vmatpush1.msra.mxu0 0.0
    %264 = vmatprep.subr.mxu0 0.0
    %265 = vmatpush1.msra.mxu0 0.0
    %266 = vmatprep.subr.mxu0 0.0
    %267 = vmatpush1.msra.mxu0 0.0
    %268 = vmatprep.subr.mxu0 0.0
    %269 = vmatpush1.msra.mxu0 0.0
    %270 = vmatprep.subr.mxu0 0.0
    %271 = vmatpush1.msra.mxu0 0.0
    %272 = vmatprep.subr.mxu0 0.0
    %273 = vmatpush1.msra.mxu0 0.0
    %274 = vmatprep.subr.mxu0 0.0
    %275 = vmatpush1.msra.mxu0 0.0
    %276 = vmatprep.subr.mxu0 0.0
    %277 = vmatpush1.msra.mxu0 0.0
    %278 = vmatprep.subr.mxu0 0.0
    %279 = vmatpush1.msra.mxu0 0.0
    %280 = vmatprep.subr.mxu0 0.0
    %281 = vmatpush1.msra.mxu0 0.0
    %282 = vmatprep.subr.mxu0 0.0
    %283 = vmatpush1.msra.mxu0 0.0
    %284 = vmatprep.subr.mxu0 0.0
    %285 = vmatpush1.msra.mxu0 0.0
    %286 = vmatprep.subr.mxu0 0.0
    %287 = vmatpush1.msra.mxu0 0.0
    %288 = vmatprep.subr.mxu0 0.0
    %289 = vmatpush1.msra.mxu0 0.0
    %290 = vmatprep.subr.mxu0 0.0
    %291 = vmatpush1.msra.mxu0 0.0
    %292 = vmatprep.subr.mxu0 0.0
    %293 = vmatpush1.msra.mxu0 0.0
    %294 = vmatprep.subr.mxu0 0.0
    %295 = vmatpush1.msra.mxu0 0.0
    %296 = vmatprep.subr.mxu0 0.0
    %297 = vmatpush1.msra.mxu0 0.0
    %298 = vmatprep.subr.mxu0 0.0
    %299 = vmatpush1.msra.mxu0 0.0
    %300 = vmatprep.subr.mxu0 0.0
    %301 = vmatpush1.msra.mxu0 0.0
    %302 = vmatprep.mubr.f32.mxu0 0.0
    %303 = vmatmul.mubr.f32.gmra.mrb[0].mxu0 %v211
    %v304 = vpop.f32.mrb[0].mxu0
    %v305 = vadd.f32 0.0, %v304
    %v306 = vpop.f32.mrb[0].mxu0
    %v307 = vadd.f32 0.0, %v306
    %308 = vmatprep.mubr.f32.mxu0 0.0
    %309 = vmatmul.mubr.f32.gmra.mrb[0].mxu0 %v214
    %v310 = vpop.f32.mrb[0].mxu0
    %v311 = vadd.f32 0.0, %v310
    %v312 = vpop.f32.mrb[0].mxu0
    %v313 = vadd.f32 0.0, %v312
    %314 = vmatprep.mubr.f32.mxu0 0.0
    %315 = vmatmul.mubr.f32.gmra.mrb[0].mxu0 %v217
    %v316 = vpop.f32.mrb[0].mxu0
    %v317 = vadd.f32 0.0, %v316
    %v318 = vpop.f32.mrb[0].mxu0
    %v319 = vadd.f32 0.0, %v318
    %320 = vdwg.mxu0
    %321 = vmatprep.subr.mxu0 %v176
    %322 = vmatpush1.msra.mxu0 %v163
    %323 = vmatprep.subr.mxu0 %v177
    %324 = vmatpush1.msra.mxu0 %v166
    %325 = vmatprep.subr.mxu0 %v230
    %326 = vmatpush1.msra.mxu0 %v227
    %327 = vmatprep.subr.mxu0 0.0
    %328 = vmatpush1.msra.mxu0 0.0
    %329 = vmatprep.subr.mxu0 0.0
    %330 = vmatpush1.msra.mxu0 0.0
    %331 = vmatprep.subr.mxu0 0.0
    %332 = vmatpush1.msra.mxu0 0.0
    %333 = vmatprep.subr.mxu0 0.0
    %334 = vmatpush1.msra.mxu0 0.0
    %335 = vmatprep.subr.mxu0 0.0
    %336 = vmatpush1.msra.mxu0 0.0
    %337 = vmatprep.subr.mxu0 0.0
    %338 = vmatpush1.msra.mxu0 0.0
    %339 = vmatprep.subr.mxu0 0.0
    %340 = vmatpush1.msra.mxu0 0.0
    %341 = vmatprep.subr.mxu0 0.0
    %342 = vmatpush1.msra.mxu0 0.0
    %343 = vmatprep.subr.mxu0 0.0
    %344 = vmatpush1.msra.mxu0 0.0
    %345 = vmatprep.subr.mxu0 0.0
    %346 = vmatpush1.msra.mxu0 0.0
    %347 = vmatprep.subr.mxu0 0.0
    %348 = vmatpush1.msra.mxu0 0.0
    %349 = vmatprep.subr.mxu0 0.0
    %350 = vmatpush1.msra.mxu0 0.0
    %351 = vmatprep.subr.mxu0 0.0
    %352 = vmatpush1.msra.mxu0 0.0
    %353 = vmatprep.subr.mxu0 0.0
    %354 = vmatpush1.msra.mxu0 0.0
    %355 = vmatprep.subr.mxu0 0.0
    %356 = vmatpush1.msra.mxu0 0.0
    %357 = vmatprep.subr.mxu0 0.0
    %358 = vmatpush1.msra.mxu0 0.0
    %359 = vmatprep.subr.mxu0 0.0
    %360 = vmatpush1.msra.mxu0 0.0
    %361 = vmatprep.subr.mxu0 0.0
    %362 = vmatpush1.msra.mxu0 0.0
    %363 = vmatprep.subr.mxu0 0.0
    %364 = vmatpush1.msra.mxu0 0.0
    %365 = vmatprep.subr.mxu0 0.0
    %366 = vmatpush1.msra.mxu0 0.0
    %367 = vmatprep.subr.mxu0 0.0
    %368 = vmatpush1.msra.mxu0 0.0
    %369 = vmatprep.subr.mxu0 0.0
    %370 = vmatpush1.msra.mxu0 0.0
    %371 = vmatprep.subr.mxu0 0.0
    %372 = vmatpush1.msra.mxu0 0.0
    %373 = vmatprep.subr.mxu0 0.0
    %374 = vmatpush1.msra.mxu0 0.0
    %375 = vmatprep.subr.mxu0 0.0
    %376 = vmatpush1.msra.mxu0 0.0
    %377 = vmatprep.subr.mxu0 0.0
    %378 = vmatpush1.msra.mxu0 0.0
    %379 = vmatprep.subr.mxu0 0.0
    %380 = vmatpush1.msra.mxu0 0.0
    %381 = vmatprep.subr.mxu0 0.0
    %382 = vmatpush1.msra.mxu0 0.0
    %383 = vmatprep.subr.mxu0 0.0
    %384 = vmatpush1.msra.mxu0 0.0
    %385 = vmatprep.mubr.f32.mxu0 0.0
    %386 = vmatmul.mubr.f32.gmra.mrb[0].mxu0 %v211
    %v387 = vpop.f32.mrb[0].mxu0
    %v388 = vadd.f32 0.0, %v387
    %v389 = vpop.f32.mrb[0].mxu0
    %v390 = vadd.f32 0.0, %v389
    %391 = vmatprep.mubr.f32.mxu0 0.0
    %392 = vmatmul.mubr.f32.gmra.mrb[0].mxu0 %v214
    %v393 = vpop.f32.mrb[0].mxu0
    %v394 = vadd.f32 0.0, %v393
    %v395 = vpop.f32.mrb[0].mxu0
    %v396 = vadd.f32 0.0, %v395
    %397 = vmatprep.mubr.f32.mxu0 0.0
    %398 = vmatmul.mubr.f32.gmra.mrb[0].mxu0 %v217
    %v399 = vpop.f32.mrb[0].mxu0
    %v400 = vadd.f32 0.0, %v399
    %v401 = vpop.f32.mrb[0].mxu0
    %v402 = vadd.f32 0.0, %v401
    %403 = vdwg.mxu0
    %404 = vmatprep.subr.mxu0 %v206
    %405 = vmatpush1.msra.mxu0 %v179
    %406 = vmatprep.subr.mxu0 %v207
    %407 = vmatpush1.msra.mxu0 %v180
    %408 = vmatprep.subr.mxu0 %v236
    %409 = vmatpush1.msra.mxu0 %v233
    %410 = vmatprep.subr.mxu0 0.0
    %411 = vmatpush1.msra.mxu0 0.0
    %412 = vmatprep.subr.mxu0 0.0
    %413 = vmatpush1.msra.mxu0 0.0
    %414 = vmatprep.subr.mxu0 0.0
    %415 = vmatpush1.msra.mxu0 0.0
    %416 = vmatprep.subr.mxu0 0.0
    %417 = vmatpush1.msra.mxu0 0.0
    %418 = vmatprep.subr.mxu0 0.0
    %419 = vmatpush1.msra.mxu0 0.0
    %420 = vmatprep.subr.mxu0 0.0
    %421 = vmatpush1.msra.mxu0 0.0
    %422 = vmatprep.subr.mxu0 0.0
    %423 = vmatpush1.msra.mxu0 0.0
    %424 = vmatprep.subr.mxu0 0.0
    %425 = vmatpush1.msra.mxu0 0.0
    %426 = vmatprep.subr.mxu0 0.0
    %427 = vmatpush1.msra.mxu0 0.0
    %428 = vmatprep.subr.mxu0 0.0
    %429 = vmatpush1.msra.mxu0 0.0
    %430 = vmatprep.subr.mxu0 0.0
    %431 = vmatpush1.msra.mxu0 0.0
    %432 = vmatprep.subr.mxu0 0.0
    %433 = vmatpush1.msra.mxu0 0.0
    %434 = vmatprep.subr.mxu0 0.0
    %435 = vmatpush1.msra.mxu0 0.0
    %436 = vmatprep.subr.mxu0 0.0
    %437 = vmatpush1.msra.mxu0 0.0
    %438 = vmatprep.subr.mxu0 0.0
    %439 = vmatpush1.msra.mxu0 0.0
    %440 = vmatprep.subr.mxu0 0.0
    %441 = vmatpush1.msra.mxu0 0.0
    %442 = vmatprep.subr.mxu0 0.0
    %443 = vmatpush1.msra.mxu0 0.0
    %444 = vmatprep.subr.mxu0 0.0
    %445 = vmatpush1.msra.mxu0 0.0
    %446 = vmatprep.subr.mxu0 0.0
    %447 = vmatpush1.msra.mxu0 0.0
    %448 = vmatprep.subr.mxu0 0.0
    %449 = vmatpush1.msra.mxu0 0.0
    %450 = vmatprep.subr.mxu0 0.0
    %451 = vmatpush1.msra.mxu0 0.0
    %452 = vmatprep.subr.mxu0 0.0
    %453 = vmatpush1.msra.mxu0 0.0
    %454 = vmatprep.subr.mxu0 0.0
    %455 = vmatpush1.msra.mxu0 0.0
    %456 = vmatprep.subr.mxu0 0.0
    %457 = vmatpush1.msra.mxu0 0.0
    %458 = vmatprep.subr.mxu0 0.0
    %459 = vmatpush1.msra.mxu0 0.0
    %460 = vmatprep.subr.mxu0 0.0
    %461 = vmatpush1.msra.mxu0 0.0
    %462 = vmatprep.subr.mxu0 0.0
    %463 = vmatpush1.msra.mxu0 0.0
    %464 = vmatprep.subr.mxu0 0.0
    %465 = vmatpush1.msra.mxu0 0.0
    %466 = vmatprep.subr.mxu0 0.0
    %467 = vmatpush1.msra.mxu0 0.0
    %468 = vmatprep.mubr.f32.mxu0 0.0
    %469 = vmatmul.mubr.f32.gmra.mrb[0].mxu0 %v211
    %v470 = vpop.f32.mrb[0].mxu0
    %v471 = vadd.f32 0.0, %v470
    %v472 = vpop.f32.mrb[0].mxu0
    %v473 = vadd.f32 0.0, %v472
    %474 = vmatprep.mubr.f32.mxu0 0.0
    %475 = vmatmul.mubr.f32.gmra.mrb[0].mxu0 %v214
    %v476 = vpop.f32.mrb[0].mxu0
    %v477 = vadd.f32 0.0, %v476
    %v478 = vpop.f32.mrb[0].mxu0
    %v479 = vadd.f32 0.0, %v478
    %480 = vmatprep.mubr.f32.mxu0 0.0
    %481 = vmatmul.mubr.f32.gmra.mrb[0].mxu0 %v217
    %v482 = vpop.f32.mrb[0].mxu0
    %v483 = vadd.f32 0.0, %v482
    %v484 = vpop.f32.mrb[0].mxu0
    %v485 = vadd.f32 0.0, %v484
    %486 = vdwg.mxu0
    %487 = vset.pattern.permute.xlu0 20
    %488 = vperm.xlu0 %487, %v19
    %v489 = vpop.permute.xlu0 %488
    %491 = vset.pattern.permute.xlu0 20
    %492 = vperm.xlu0 %491, %v23
    %v493 = vpop.permute.xlu0 %492
    %495 = vset.pattern.permute.xlu0 20
    %496 = vperm.xlu0 %495, %v27
    %v497 = vpop.permute.xlu0 %496
    %v499 = vadd.f32 %v305, %v489
    %v500 = vadd.f32 %v307, %v489
    %v501 = vadd.f32 %v388, %v489
    %v502 = vadd.f32 %v311, %v493
    %v503 = vadd.f32 %v313, %v493
    %v504 = vadd.f32 %v394, %v493
    %v505 = vadd.f32 %v317, %v497
    %v506 = vadd.f32 %v319, %v497
    %v507 = vadd.f32 %v400, %v497
    %v508 = vtanh.pop %v499
    %v509 = vtanh.pop %v500
    %v510 = vtanh.pop %v501
    %v511 = vtanh.pop %v502
    %v512 = vtanh.pop %v503
    %v513 = vtanh.pop %v504
    %v514 = vtanh.pop %v505
    %v515 = vtanh.pop %v506
    %v516 = vtanh.pop %v507
    %v517 = vmul.f32 %v508, %v508
    %v518 = vmul.f32 %v511, %v511
    %v519 = vmul.f32 %v514, %v514
    %v520 = vsub.f32 1.0, %v517
    %v521 = vsub.f32 1.0, %v518
    %v522 = vsub.f32 1.0, %v519
    %v523 = vmul.f32 %v520, %v390
    %v524 = vmul.f32 %v521, %v396
    %v525 = vmul.f32 %v522, %v402
    %v526 = vmul.f32 %v520, %v471
    %v527 = vmul.f32 %v521, %v477
    %v528 = vmul.f32 %v522, %v483
    %v529 = vmul.f32 %v508, 2.0
    %v530 = vmul.f32 %v511, 2.0
    %v531 = vmul.f32 %v514, 2.0
    %v532 = vmul.f32 %v529, %v471
    %v533 = vmul.f32 %v530, %v477
    %v534 = vmul.f32 %v531, %v483
    %v535 = vmul.f32 %v532, %v471
    %v536 = vmul.f32 %v533, %v477
    %v537 = vmul.f32 %v534, %v483
    %v538 = vsub.f32 %v473, %v535
    %v539 = vsub.f32 %v479, %v536
    %v540 = vsub.f32 %v485, %v537
    %v541 = vmul.f32 %v520, %v538
    %v542 = vmul.f32 %v521, %v539
    %v543 = vmul.f32 %v522, %v540
    %v545 = vsel %vm209, %v20, 0
    %v548 = vsel %vm209, %v24, 0
    %v551 = vsel %vm209, %v28, 0
    %v554 = vsel %vm219, %v514, 0
    %v557 = vsel %vm219, %v515, 0
    %v560 = vsel %vm219, %v516, 0
    %v563 = vsel %vm219, %v525, 0
    %v566 = vsel %vm219, %v528, 0
    %v569 = vsel %vm219, %v543, 0
    %571 = vmatprep.subr.mxu0 %v509
    %572 = vmatpush1.msra.mxu0 %v508
    %573 = vmatprep.subr.mxu0 %v512
    %574 = vmatpush1.msra.mxu0 %v511
    %575 = vmatprep.subr.mxu0 %v557
    %576 = vmatpush1.msra.mxu0 %v554
    %577 = vmatprep.subr.mxu0 0.0
    %578 = vmatpush1.msra.mxu0 0.0
    %579 = vmatprep.subr.mxu0 0.0
    %580 = vmatpush1.msra.mxu0 0.0
    %581 = vmatprep.subr.mxu0 0.0
    %582 = vmatpush1.msra.mxu0 0.0
    %583 = vmatprep.subr.mxu0 0.0
    %584 = vmatpush1.msra.mxu0 0.0
    %585 = vmatprep.subr.mxu0 0.0
    %586 = vmatpush1.msra.mxu0 0.0
    %587 = vmatprep.subr.mxu0 0.0
    %588 = vmatpush1.msra.mxu0 0.0
    %589 = vmatprep.subr.mxu0 0.0
    %590 = vmatpush1.msra.mxu0 0.0
    %591 = vmatprep.subr.mxu0 0.0
    %592 = vmatpush1.msra.mxu0 0.0
    %593 = vmatprep.subr.mxu0 0.0
    %594 = vmatpush1.msra.mxu0 0.0
    %595 = vmatprep.subr.mxu0 0.0
    %596 = vmatpush1.msra.mxu0 0.0
    %597 = vmatprep.subr.mxu0 0.0
    %598 = vmatpush1.msra.mxu0 0.0
    %599 = vmatprep.subr.mxu0 0.0
    %600 = vmatpush1.msra.mxu0 0.0
    %601 = vmatprep.subr.mxu0 0.0
    %602 = vmatpush1.msra.mxu0 0.0
    %603 = vmatprep.subr.mxu0 0.0
    %604 = vmatpush1.msra.mxu0 0.0
    %605 = vmatprep.subr.mxu0 0.0
    %606 = vmatpush1.msra.mxu0 0.0
    %607 = vmatprep.subr.mxu0 0.0
    %608 = vmatpush1.msra.mxu0 0.0
    %609 = vmatprep.subr.mxu0 0.0
    %610 = vmatpush1.msra.mxu0 0.0
    %611 = vmatprep.subr.mxu0 0.0
    %612 = vmatpush1.msra.mxu0 0.0
    %613 = vmatprep.subr.mxu0 0.0
    %614 = vmatpush1.msra.mxu0 0.0
    %615 = vmatprep.subr.mxu0 0.0
    %616 = vmatpush1.msra.mxu0 0.0
    %617 = vmatprep.subr.mxu0 0.0
    %618 = vmatpush1.msra.mxu0 0.0
    %619 = vmatprep.subr.mxu0 0.0
    %620 = vmatpush1.msra.mxu0 0.0
    %621 = vmatprep.subr.mxu0 0.0
    %622 = vmatpush1.msra.mxu0 0.0
    %623 = vmatprep.subr.mxu0 0.0
    %624 = vmatpush1.msra.mxu0 0.0
    %625 = vmatprep.subr.mxu0 0.0
    %626 = vmatpush1.msra.mxu0 0.0
    %627 = vmatprep.subr.mxu0 0.0
    %628 = vmatpush1.msra.mxu0 0.0
    %629 = vmatprep.subr.mxu0 0.0
    %630 = vmatpush1.msra.mxu0 0.0
    %631 = vmatprep.subr.mxu0 0.0
    %632 = vmatpush1.msra.mxu0 0.0
    %633 = vmatprep.subr.mxu0 0.0
    %634 = vmatpush1.msra.mxu0 0.0
    %635 = vmatprep.mubr.f32.mxu0 0.0
    %636 = vmatmul.mubr.f32.gmra.mrb[0].mxu0 %v545
    %v637 = vpop.f32.mrb[0].mxu0
    %v638 = vadd.f32 0.0, %v637
    %v639 = vpop.f32.mrb[0].mxu0
    %v640 = vadd.f32 0.0, %v639
    %641 = vmatprep.mubr.f32.mxu0 0.0
    %642 = vmatmul.mubr.f32.gmra.mrb[0].mxu0 %v548
    %v643 = vpop.f32.mrb[0].mxu0
    %v644 = vadd.f32 0.0, %v643
    %v645 = vpop.f32.mrb[0].mxu0
    %v646 = vadd.f32 0.0, %v645
    %647 = vmatprep.mubr.f32.mxu0 0.0
    %648 = vmatmul.mubr.f32.gmra.mrb[0].mxu0 %v551
    %v649 = vpop.f32.mrb[0].mxu0
    %v650 = vadd.f32 0.0, %v649
    %v651 = vpop.f32.mrb[0].mxu0
    %v652 = vadd.f32 0.0, %v651
    %653 = vdwg.mxu0
    %654 = vmatprep.subr.mxu0 %v523
    %655 = vmatpush1.msra.mxu0 %v510
    %656 = vmatprep.subr.mxu0 %v524
    %657 = vmatpush1.msra.mxu0 %v513
    %658 = vmatprep.subr.mxu0 %v563
    %659 = vmatpush1.msra.mxu0 %v560
    %660 = vmatprep.subr.mxu0 0.0
    %661 = vmatpush1.msra.mxu0 0.0
    %662 = vmatprep.subr.mxu0 0.0
    %663 = vmatpush1.msra.mxu0 0.0
    %664 = vmatprep.subr.mxu0 0.0
    %665 = vmatpush1.msra.mxu0 0.0
    %666 = vmatprep.subr.mxu0 0.0
    %667 = vmatpush1.msra.mxu0 0.0
    %668 = vmatprep.subr.mxu0 0.0
    %669 = vmatpush1.msra.mxu0 0.0
    %670 = vmatprep.subr.mxu0 0.0
    %671 = vmatpush1.msra.mxu0 0.0
    %672 = vmatprep.subr.mxu0 0.0
    %673 = vmatpush1.msra.mxu0 0.0
    %674 = vmatprep.subr.mxu0 0.0
    %675 = vmatpush1.msra.mxu0 0.0
    %676 = vmatprep.subr.mxu0 0.0
    %677 = vmatpush1.msra.mxu0 0.0
    %678 = vmatprep.subr.mxu0 0.0
    %679 = vmatpush1.msra.mxu0 0.0
    %680 = vmatprep.subr.mxu0 0.0
    %681 = vmatpush1.msra.mxu0 0.0
    %682 = vmatprep.subr.mxu0 0.0
    %683 = vmatpush1.msra.mxu0 0.0
    %684 = vmatprep.subr.mxu0 0.0
    %685 = vmatpush1.msra.mxu0 0.0
    %686 = vmatprep.subr.mxu0 0.0
    %687 = vmatpush1.msra.mxu0 0.0
    %688 = vmatprep.subr.mxu0 0.0
    %689 = vmatpush1.msra.mxu0 0.0
    %690 = vmatprep.subr.mxu0 0.0
    %691 = vmatpush1.msra.mxu0 0.0
    %692 = vmatprep.subr.mxu0 0.0
    %693 = vmatpush1.msra.mxu0 0.0
    %694 = vmatprep.subr.mxu0 0.0
    %695 = vmatpush1.msra.mxu0 0.0
    %696 = vmatprep.subr.mxu0 0.0
    %697 = vmatpush1.msra.mxu0 0.0
    %698 = vmatprep.subr.mxu0 0.0
    %699 = vmatpush1.msra.mxu0 0.0
    %700 = vmatprep.subr.mxu0 0.0
    %701 = vmatpush1.msra.mxu0 0.0
    %702 = vmatprep.subr.mxu0 0.0
    %703 = vmatpush1.msra.mxu0 0.0
    %704 = vmatprep.subr.mxu0 0.0
    %705 = vmatpush1.msra.mxu0 0.0
    %706 = vmatprep.subr.mxu0 0.0
    %707 = vmatpush1.msra.mxu0 0.0
    %708 = vmatprep.subr.mxu0 0.0
    %709 = vmatpush1.msra.mxu0 0.0
    %710 = vmatprep.subr.mxu0 0.0
    %711 = vmatpush1.msra.mxu0 0.0
    %712 = vmatprep.subr.mxu0 0.0
    %713 = vmatpush1.msra.mxu0 0.0
    %714 = vmatprep.subr.mxu0 0.0
    %715 = vmatpush1.msra.mxu0 0.0
    %716 = vmatprep.subr.mxu0 0.0
    %717 = vmatpush1.msra.mxu0 0.0
    %718 = vmatprep.mubr.f32.mxu0 0.0
    %719 = vmatmul.mubr.f32.gmra.mrb[0].mxu0 %v545
    %v720 = vpop.f32.mrb[0].mxu0
    %v721 = vadd.f32 0.0, %v720
    %v722 = vpop.f32.mrb[0].mxu0
    %v723 = vadd.f32 0.0, %v722
    %724 = vmatprep.mubr.f32.mxu0 0.0
    %725 = vmatmul.mubr.f32.gmra.mrb[0].mxu0 %v548
    %v726 = vpop.f32.mrb[0].mxu0
    %v727 = vadd.f32 0.0, %v726
    %v728 = vpop.f32.mrb[0].mxu0
    %v729 = vadd.f32 0.0, %v728
    %730 = vmatprep.mubr.f32.mxu0 0.0
    %731 = vmatmul.mubr.f32.gmra.mrb[0].mxu0 %v551
    %v732 = vpop.f32.mrb[0].mxu0
    %v733 = vadd.f32 0.0, %v732
    %v734 = vpop.f32.mrb[0].mxu0
    %v735 = vadd.f32 0.0, %v734
    %736 = vdwg.mxu0
    %737 = vmatprep.subr.mxu0 %v541
    %738 = vmatpush1.msra.mxu0 %v526
    %739 = vmatprep.subr.mxu0 %v542
    %740 = vmatpush1.msra.mxu0 %v527
    %741 = vmatprep.subr.mxu0 %v569
    %742 = vmatpush1.msra.mxu0 %v566
    %743 = vmatprep.subr.mxu0 0.0
    %744 = vmatpush1.msra.mxu0 0.0
    %745 = vmatprep.subr.mxu0 0.0
    %746 = vmatpush1.msra.mxu0 0.0
    %747 = vmatprep.subr.mxu0 0.0
    %748 = vmatpush1.msra.mxu0 0.0
    %749 = vmatprep.subr.mxu0 0.0
    %750 = vmatpush1.msra.mxu0 0.0
    %751 = vmatprep.subr.mxu0 0.0
    %752 = vmatpush1.msra.mxu0 0.0
    %753 = vmatprep.subr.mxu0 0.0
    %754 = vmatpush1.msra.mxu0 0.0
    %755 = vmatprep.subr.mxu0 0.0
    %756 = vmatpush1.msra.mxu0 0.0
    %757 = vmatprep.subr.mxu0 0.0
    %758 = vmatpush1.msra.mxu0 0.0
    %759 = vmatprep.subr.mxu0 0.0
    %760 = vmatpush1.msra.mxu0 0.0
    %761 = vmatprep.subr.mxu0 0.0
    %762 = vmatpush1.msra.mxu0 0.0
    %763 = vmatprep.subr.mxu0 0.0
    %764 = vmatpush1.msra.mxu0 0.0
    %765 = vmatprep.subr.mxu0 0.0
    %766 = vmatpush1.msra.mxu0 0.0
    %767 = vmatprep.subr.mxu0 0.0
    %768 = vmatpush1.msra.mxu0 0.0
    %769 = vmatprep.subr.mxu0 0.0
    %770 = vmatpush1.msra.mxu0 0.0
    %771 = vmatprep.subr.mxu0 0.0
    %772 = vmatpush1.msra.mxu0 0.0
    %773 = vmatprep.subr.mxu0 0.0
    %774 = vmatpush1.msra.mxu0 0.0
    %775 = vmatprep.subr.mxu0 0.0
    %776 = vmatpush1.msra.mxu0 0.0
    %777 = vmatprep.subr.mxu0 0.0
    %778 = vmatpush1.msra.mxu0 0.0
    %779 = vmatprep.subr.mxu0 0.0
    %780 = vmatpush1.msra.mxu0 0.0
    %781 = vmatprep.subr.mxu0 0.0
    %782 = vmatpush1.msra.mxu0 0.0
    %783 = vmatprep.subr.mxu0 0.0
    %784 = vmatpush1.msra.mxu0 0.0
    %785 = vmatprep.subr.mxu0 0.0
    %786 = vmatpush1.msra.mxu0 0.0
    %787 = vmatprep.subr.mxu0 0.0
    %788 = vmatpush1.msra.mxu0 0.0
    %789 = vmatprep.subr.mxu0 0.0
    %790 = vmatpush1.msra.mxu0 0.0
    %791 = vmatprep.subr.mxu0 0.0
    %792 = vmatpush1.msra.mxu0 0.0
    %793 = vmatprep.subr.mxu0 0.0
    %794 = vmatpush1.msra.mxu0 0.0
    %795 = vmatprep.subr.mxu0 0.0
    %796 = vmatpush1.msra.mxu0 0.0
    %797 = vmatprep.subr.mxu0 0.0
    %798 = vmatpush1.msra.mxu0 0.0
    %799 = vmatprep.subr.mxu0 0.0
    %800 = vmatpush1.msra.mxu0 0.0
    %801 = vmatprep.mubr.f32.mxu0 0.0
    %802 = vmatmul.mubr.f32.gmra.mrb[0].mxu0 %v545
    %v803 = vpop.f32.mrb[0].mxu0
    %v804 = vadd.f32 0.0, %v803
    %v805 = vpop.f32.mrb[0].mxu0
    %v806 = vadd.f32 0.0, %v805
    %807 = vmatprep.mubr.f32.mxu0 0.0
    %808 = vmatmul.mubr.f32.gmra.mrb[0].mxu0 %v548
    %v809 = vpop.f32.mrb[0].mxu0
    %v810 = vadd.f32 0.0, %v809
    %v811 = vpop.f32.mrb[0].mxu0
    %v812 = vadd.f32 0.0, %v811
    %813 = vmatprep.mubr.f32.mxu0 0.0
    %814 = vmatmul.mubr.f32.gmra.mrb[0].mxu0 %v551
    %v815 = vpop.f32.mrb[0].mxu0
    %v816 = vadd.f32 0.0, %v815
    %v817 = vpop.f32.mrb[0].mxu0
    %v818 = vadd.f32 0.0, %v817
    %819 = vdwg.mxu0
    %820 = vset.pattern.permute.xlu0 20
    %821 = vperm.xlu0 %820, %v20
    %v822 = vpop.permute.xlu0 %821
    %824 = vset.pattern.permute.xlu0 20
    %825 = vperm.xlu0 %824, %v24
    %v826 = vpop.permute.xlu0 %825
    %828 = vset.pattern.permute.xlu0 20
    %829 = vperm.xlu0 %828, %v28
    %v830 = vpop.permute.xlu0 %829
    %v832 = vadd.f32 %v638, %v822
    %v833 = vadd.f32 %v640, %v822
    %v834 = vadd.f32 %v721, %v822
    %v835 = vadd.f32 %v644, %v826
    %v836 = vadd.f32 %v646, %v826
    %v837 = vadd.f32 %v727, %v826
    %v838 = vadd.f32 %v650, %v830
    %v839 = vadd.f32 %v652, %v830
    %v840 = vadd.f32 %v733, %v830
    %v841 = vtanh.pop %v832
    %v842 = vtanh.pop %v833
    %v843 = vtanh.pop %v834
    %v844 = vtanh.pop %v835
    %v845 = vtanh.pop %v836
    %v846 = vtanh.pop %v837
    %v847 = vtanh.pop %v838
    %v848 = vtanh.pop %v839
    %v849 = vtanh.pop %v840
    %v850 = vmul.f32 %v841, %v841
    %v851 = vmul.f32 %v844, %v844
    %v852 = vmul.f32 %v847, %v847
    %v853 = vsub.f32 1.0, %v850
    %v854 = vsub.f32 1.0, %v851
    %v855 = vsub.f32 1.0, %v852
    %v856 = vmul.f32 %v853, %v723
    %v857 = vmul.f32 %v854, %v729
    %v858 = vmul.f32 %v855, %v735
    %v859 = vmul.f32 %v853, %v804
    %v860 = vmul.f32 %v854, %v810
    %v861 = vmul.f32 %v855, %v816
    %v862 = vmul.f32 %v841, 2.0
    %v863 = vmul.f32 %v844, 2.0
    %v864 = vmul.f32 %v847, 2.0
    %v865 = vmul.f32 %v862, %v804
    %v866 = vmul.f32 %v863, %v810
    %v867 = vmul.f32 %v864, %v816
    %v868 = vmul.f32 %v865, %v804
    %v869 = vmul.f32 %v866, %v810
    %v870 = vmul.f32 %v867, %v816
    %v871 = vsub.f32 %v806, %v868
    %v872 = vsub.f32 %v812, %v869
    %v873 = vsub.f32 %v818, %v870
    %v874 = vmul.f32 %v853, %v871
    %v875 = vmul.f32 %v854, %v872
    %v876 = vmul.f32 %v855, %v873
    %878 = vset.pattern.permute.xlu0 0
    %879 = vperm.xlu0 %878, %v21
    %v880 = vpop.permute.xlu0 %879
    %883 = vset.pattern.permute.xlu0 0
    %884 = vperm.xlu0 %883, %v25
    %v885 = vpop.permute.xlu0 %884
    %888 = vset.pattern.permute.xlu0 0
    %889 = vperm.xlu0 %888, %v29
    %v890 = vpop.permute.xlu0 %889
    %v892 = vmul.f32 %v880, %v841
    %v893 = vmul.f32 %v880, %v842
    %v894 = vmul.f32 %v880, %v843
    %v895 = vmul.f32 %v880, %v856
    %v896 = vmul.f32 %v880, %v859
    %v897 = vmul.f32 %v880, %v874
    %v898 = vmul.f32 %v885, %v844
    %v899 = vmul.f32 %v885, %v845
    %v900 = vmul.f32 %v885, %v846
    %v901 = vmul.f32 %v885, %v857
    %v902 = vmul.f32 %v885, %v860
    %v903 = vmul.f32 %v885, %v875
    %v904 = vmul.f32 %v890, %v847
    %v905 = vmul.f32 %v890, %v848
    %v906 = vmul.f32 %v890, %v849
    %v907 = vmul.f32 %v890, %v858
    %v908 = vmul.f32 %v890, %v861
    %v909 = vmul.f32 %v890, %v876
    %v910 = vadd.f32 %v892, %v898
    %v911 = vsel %vm219, %v904, 0.0
    %v912 = vadd.f32 %v910, %v911
    %v913 = vrot.slane %v912, 4
    %v914 = vadd.f32 %v912, %v913
    %v915 = vrot.slane %v914, 2
    %v916 = vadd.f32 %v914, %v915
    %v917 = vrot.slane %v916, 1
    %v918 = vadd.f32 %v916, %v917
    %v919 = vadd.f32 %v893, %v899
    %v920 = vsel %vm219, %v905, 0.0
    %v921 = vadd.f32 %v919, %v920
    %v922 = vrot.slane %v921, 4
    %v923 = vadd.f32 %v921, %v922
    %v924 = vrot.slane %v923, 2
    %v925 = vadd.f32 %v923, %v924
    %v926 = vrot.slane %v925, 1
    %v927 = vadd.f32 %v925, %v926
    %v928 = vadd.f32 %v894, %v900
    %v929 = vsel %vm219, %v906, 0.0
    %v930 = vadd.f32 %v928, %v929
    %v931 = vrot.slane %v930, 4
    %v932 = vadd.f32 %v930, %v931
    %v933 = vrot.slane %v932, 2
    %v934 = vadd.f32 %v932, %v933
    %v935 = vrot.slane %v934, 1
    %v936 = vadd.f32 %v934, %v935
    %v937 = vadd.f32 %v895, %v901
    %v938 = vsel %vm219, %v907, 0.0
    %v939 = vadd.f32 %v937, %v938
    %v940 = vrot.slane %v939, 4
    %v941 = vadd.f32 %v939, %v940
    %v942 = vrot.slane %v941, 2
    %v943 = vadd.f32 %v941, %v942
    %v944 = vrot.slane %v943, 1
    %v945 = vadd.f32 %v943, %v944
    %v946 = vadd.f32 %v896, %v902
    %v947 = vsel %vm219, %v908, 0.0
    %v948 = vadd.f32 %v946, %v947
    %v949 = vrot.slane %v948, 4
    %v950 = vadd.f32 %v948, %v949
    %v951 = vrot.slane %v950, 2
    %v952 = vadd.f32 %v950, %v951
    %v953 = vrot.slane %v952, 1
    %v954 = vadd.f32 %v952, %v953
    %v955 = vadd.f32 %v897, %v903
    %v956 = vsel %vm219, %v909, 0.0
    %v957 = vadd.f32 %v955, %v956
    %v958 = vrot.slane %v957, 4
    %v959 = vadd.f32 %v957, %v958
    %v960 = vrot.slane %v959, 2
    %v961 = vadd.f32 %v959, %v960
    %v962 = vrot.slane %v961, 1
    %v963 = vadd.f32 %v961, %v962
    %964 = vset.pattern.permute.xlu0 1
    %965 = vperm.xlu0 %964, %v21
    %v966 = vpop.permute.xlu0 %965
    %v968 = vadd.f32 %v918, %v966
    %v969 = vadd.f32 %v927, %v966
    %v970 = vadd.f32 %v936, %v966
    %v971 = vmul.f32 %v968, %v954
    %v972 = vadd.f32 %v945, %v971
    %v973 = vmul.f32 %v963, 0.003183099
    %v974 = vsub.f32 %v972, %v973
    %v975 = vld [vmem:[%s1] sm:$0x3]
    %v977 = vlaneseq
    %v978 = vshrl.u32 %v977, 7
    %v979 = vsub.s32 0, %v978
    %v980 = vrot.slane %v975, %v979
    %v981 = vlaneseq
    %v982 = vshrl.u32 %v981, 7
    %v983 = vsub.s32 1, %v982
    %v984 = vrot.slane %v975, %v983
    %v987 = vsub.f32 %v969, %v980
    %v988 = vsub.f32 %v970, %v984
    %v989 = vld [vmem:[%s2] sm:$0x7]
    %v993 = vcombine.low %v974, %v987
    %v995 = vunpack.c.l.s4 1966171168
    %v996 = vunpack.c.0.s8 %v995
    %v997 = vlaneseq
    %v998 = vshrl.u32 %v997, 7
    %v999 = vsub.s32 %v996, %v998
    %v1000 = vrot.slane %v993, %v999
    %v1002 = vunpack.c.l.s4 1966171168
    %v1003 = vunpack.c.0.s8 %v1002
    %v1004 = vlaneseq
    %v1005 = vshrl.u32 %v1004, 7
    %v1006 = vsub.s32 %v1003, %v1005
    %v1007 = vrot.slane %v988, %v1006
    %v1008 = vcombine.low %v1000, %v1007
    %v1010 = vunpack.c.l.s4 1966171168
    %v1011 = vunpack.c.0.s8 %v1010
    %v1012 = vlaneseq
    %v1013 = vshrl.u32 %v1012, 7
    %v1014 = vsub.s32 %v1011, %v1013
    %v1015 = vrot.slane %v1008, %v1014
    %v1017 = vmul.f32 %v989, %v1015
    %v1018 = vmul.f32 %v1017, %v1015
    %v1020 = vlaneseq
    %v1021 = vshrl.u32 %v1020, 7
    %v1022 = vsub.s32 0, %v1021
    %v1023 = vrot.slane %v1018, %v1022
    %v1024 = vlaneseq
    %v1025 = vshrl.u32 %v1024, 7
    %v1026 = vsub.s32 1, %v1025
    %v1027 = vrot.slane %v1018, %v1026
    %v1028 = vlaneseq
    %v1029 = vshrl.u32 %v1028, 7
    %v1030 = vsub.s32 2, %v1029
    %v1031 = vrot.slane %v1018, %v1030
    %vm1035 = vcmask 1040384
    %v1036 = vsel %vm1035, %v1023, 0.0
    %v1037 = vsel %vm1035, %v1027, 0.0
    %v1038 = vadd.f32 %v1036, %v1037
    %v1039 = vsel %vm1035, %v1031, 0.0
    %v1040 = vadd.f32 %v1038, %v1039
    %1041 = vadd.xlane.f32.xlu0 %v1040
    %v1042 = vpop.xlane.xlu0 %1041
    %v1043 = vrot.slane %v1042, 4
    %v1044 = vadd.f32 %v1042, %v1043
    %v1045 = vrot.slane %v1044, 2
    %v1046 = vadd.f32 %v1044, %v1045
    %v1047 = vrot.slane %v1046, 1
    %v1048 = vadd.f32 %v1046, %v1047
    %s1049 = vtos %v1048
    %s1050 = scalar_lea.smem [#allocation2], 0
    %1051 = sst [smem:[%s1050]] %s1049
    // Predicated region
    $region18: #{burgers_pinn_loss.1} parent=1 // pred_check
      _
    $region19: #{burgers_pinn_loss.1} parent=1 // pred_check_branch
      %1053 = sbr.rel (0) target = $region21
    $region20: #{burgers_pinn_loss.1} parent=1 // pred_region
      %s1055 = ssub.s32 16, 16
      %1056 = vsyncadd [#allocation3], %s1055
      %1059 = dma.smem_to_hbm [#allocation2], 16, %s4, [#allocation3]
    $region21: #{burgers_pinn_loss.1} parent=1 // pred_fallthru
      _
    // Predicated region
    $region22: #{burgers_pinn_loss.1} parent=1 // pred_check
      _
    $region23: #{burgers_pinn_loss.1} parent=1 // pred_check_branch
      %1061 = sbr.rel (0) target = $region25
    $region24: #{burgers_pinn_loss.1} parent=1 // pred_region
      %1062 = dma.done [#allocation3], 16
    $region25: #{burgers_pinn_loss.1} parent=1 // pred_fallthru
      _
    %1063 = sfence
    %1064 = vsyncpa [#allocation3], 1

</llo_original>
